<compile_context>
chip_gen: v7x
topology: tpu7x:2x2x1
jax: 0.10.0
libtpu: 0.0.40
codegen_flags: <defaults>
</compile_context>

<pallas_src>
import functools
import math

import jax
import jax.numpy as jnp
from jax.experimental import pallas as pl
from jax.experimental.pallas import tpu as pltpu


def _cdiv(a, b):
    return (a + b - 1) // b


def _round_up(x, m):
    return (x + m - 1) // m * m


def _ffn_kernel(act_flags, compute_dtype, *refs):
    """Fused Linear(+relu) chain on one batch tile, batch-on-lanes layout.

    refs = (x_ref, w0_ref, b0_ref, w1_ref, b1_ref, ..., out_ref)
      x_ref:   (n_in, tn)      features on sublanes, batch columns on lanes
      wi_ref:  (out_i, in_i)   PyTorch-native weight, pre-cast to compute_dtype
      bi_ref:  (out_i, 1)      f32 bias column (lane-broadcast inside the kernel)
      out_ref: (n_out, tn)
    act_flags[i] == True -> relu after linear i.
    """
    x_ref = refs[0]
    out_ref = refs[-1]
    param_refs = refs[1:-1]
    n_lin = len(param_refs) // 2
    assert n_lin == len(act_flags)

    h = x_ref[...].astype(compute_dtype)                       # (in0, tn)
    for li in range(n_lin):
        w = param_refs[2 * li][...]                            # (out, in), compute_dtype
        b = param_refs[2 * li + 1][...]                        # (out, 1) f32
        acc = jnp.dot(w, h, preferred_element_type=jnp.float32) + b   # (out, tn) f32
        if act_flags[li]:
            acc = jnp.maximum(acc, 0.0)                        # relu in f32 (VPU)
        if li + 1 < n_lin:
            h = acc.astype(compute_dtype)                      # feed next MXU pass
        else:
            out_ref[...] = acc.astype(out_ref.dtype)           # lane-dense store


def ffn_forward(x, params, act_flags, *, tn=8192, compute_dtype=jnp.bfloat16):
    """Run the fused FFN kernel.

    x:         (N, n_in) float32
    params:    list of (W, b) with W shape (out, in)  [PyTorch nn.Linear layout],
               b shape (out,)
    act_flags: tuple of bools, one per linear (relu after that linear or not)
    """
    N, n_in = x.shape
    assert params[0][0].shape[1] == n_in
    n_out = params[-1][0].shape[0]

    # ---- batch tiling on lanes ------------------------------------------------
    # Big tiles (>= ~0.5 MiB of DMA per step) to beat the ~0.35us per-step pipeline
    # overhead; rebalanced so batch padding stays small; >=2 steps for large N so
    # both v7x TensorCores get work on the "parallel" grid axis.
    n_steps = max(1, _cdiv(N, tn))
    if n_steps == 1 and N >= 4096:
        n_steps = 2
    tn = _round_up(_cdiv(N, n_steps), 128)
    n_pad = n_steps * tn

    # True-width transpose (features -> sublanes, batch -> lanes). No 128-lane pad
    # of HBM tensors anymore; only the batch dim is zero-extended to the tile size.
    # TODO(synk): if the upstream producer can emit x already as (n_in, N), this
    # transpose disappears entirely.
    x_t = x.T                                                   # (n_in, N)
    if n_pad != N:
        x_t = jnp.pad(x_t, ((0, 0), (0, n_pad - N)))

    flat_params = []
    in_specs = [pl.BlockSpec((n_in, tn), lambda i: (0, i))]
    for (w, b) in params:
        out_d, in_d = w.shape
        # Pre-cast weights to compute dtype (resident, one-time DMA); f32 biases.
        flat_params.append(w.astype(compute_dtype))
        flat_params.append(b.reshape(out_d, 1).astype(jnp.float32))
        # Whole-array blocks with constant index_map -> loaded once, stay resident.
        in_specs.append(pl.BlockSpec((out_d, in_d), lambda i: (0, 0)))
        in_specs.append(pl.BlockSpec((out_d, 1), lambda i: (0, 0)))

    kernel = functools.partial(_ffn_kernel, act_flags, compute_dtype)

    flops = 2 * n_pad * sum(w.shape[0] * w.shape[1] for (w, _) in params)
    bytes_accessed = (
        x_t.size * x_t.dtype.itemsize
        + sum(p.size * p.dtype.itemsize for p in flat_params)
        + n_pad * n_out * x.dtype.itemsize
    )

    out_t = pl.pallas_call(
        kernel,
        out_shape=jax.ShapeDtypeStruct((n_out, n_pad), x.dtype),
        grid=(n_steps,),
        in_specs=in_specs,
        out_specs=pl.BlockSpec((n_out, tn), lambda i: (0, i)),
        compiler_params=pltpu.CompilerParams(
            dimension_semantics=("parallel",)),
        cost_estimate=pl.CostEstimate(
            flops=flops, transcendentals=0, bytes_accessed=bytes_accessed),
    )(x_t, *flat_params)

    return out_t[:, :N].T                                       # (N, n_out)


def _init_linear(key, n_in, n_out):
    """Deterministic init mimicking nn.Linear default (uniform +/- 1/sqrt(n_in)).

    Returns W with PyTorch layout (n_out, n_in) and b (n_out,).
    """
    kw, kb = jax.random.split(key)
    bound = 1.0 / math.sqrt(n_in)
    w = jax.random.uniform(kw, (n_out, n_in), jnp.float32, -bound, bound)
    b = jax.random.uniform(kb, (n_out,), jnp.float32, -bound, bound)
    return w, b


def build_ffn_params(key, config):
    """Flatten the FFN(config) structure into an ordered list of (W, b) linears
    plus per-linear relu flags matching FFN.forward exactly."""
    params = []
    act_flags = []
    # self.layers: an MLP for every config entry except the last
    for cfg in config[:-1]:
        key, k1, k2 = jax.random.split(key, 3)
        params.append(_init_linear(k1, cfg["n_in"], cfg["n_hidden"]))
        act_flags.append(True)   # MLP-internal activation
        params.append(_init_linear(k2, cfg["n_hidden"], cfg["n_out"]))
        act_flags.append(True)   # FFN-level activation after each MLP
    # out_layer
    last = config[-1]
    if last.get("n_hidden") is None:
        key, k1 = jax.random.split(key)
        params.append(_init_linear(k1, last["n_in"], last["n_out"]))
        act_flags.append(False)  # no activation after final Linear
    else:
        key, k1, k2 = jax.random.split(key, 3)
        params.append(_init_linear(k1, last["n_in"], last["n_hidden"]))
        act_flags.append(True)   # MLP-internal activation
        params.append(_init_linear(k2, last["n_hidden"], last["n_out"]))
        act_flags.append(False)  # MLP output is the FFN output: no trailing act
    return params, tuple(act_flags)


def ffn_reference(x, params, act_flags, compute_dtype=jnp.bfloat16):
    """Pure-JAX reference using the same compute-dtype-input / f32-accumulate math."""
    h = x
    for (w, b), act in zip(params, act_flags):
        acc = jnp.dot(h.astype(compute_dtype), w.T.astype(compute_dtype),
                      preferred_element_type=jnp.float32) + b
        if act:
            acc = jnp.maximum(acc, 0.0)
        h = acc
    return h.astype(x.dtype)


if __name__ == "__main__":
    # FFN config: two hidden MLP blocks + plain Linear out_layer (no n_hidden in
    # last entry), activation='relu', if_batch_normalized=False.
    # TODO(synk): if_batch_normalized=True (BatchNorm1d inside MLP) is not implemented.
    config = [
        {"n_in": 16, "n_hidden": 32, "n_out": 32},
        {"n_in": 32, "n_hidden": 32, "n_out": 24},
        {"n_in": 24, "n_out": 8},
    ]

    key = jax.random.PRNGKey(0)
    kx, kp = jax.random.split(key)

    N = 64  # batch of feature vectors (small demo -> single grid step)
    x = jax.random.normal(kx, (N, config[0]["n_in"]), jnp.float32)

    params, act_flags = build_ffn_params(kp, config)

    out = ffn_forward(x, params, act_flags)
    out = jax.block_until_ready(out)

    ref = ffn_reference(x, params, act_flags)
    assert out.shape == (N, config[-1]["n_out"])
    assert jnp.allclose(out, ref, atol=2e-3, rtol=2e-3), "mismatch vs reference"

    print("KERNEL_OK")
</pallas_src>

<mosaic_0001>
module attributes {stable_mosaic.version = 11 : i64} {
  func.func @_ffn_kernel(%arg0: i32, %arg1: memref<16x128xf32, #tpu.memory_space<vmem>>, %arg2: memref<32x16xbf16, #tpu.memory_space<vmem>>, %arg3: memref<32x1xf32, #tpu.memory_space<vmem>>, %arg4: memref<32x32xbf16, #tpu.memory_space<vmem>>, %arg5: memref<32x1xf32, #tpu.memory_space<vmem>>, %arg6: memref<32x32xbf16, #tpu.memory_space<vmem>>, %arg7: memref<32x1xf32, #tpu.memory_space<vmem>>, %arg8: memref<24x32xbf16, #tpu.memory_space<vmem>>, %arg9: memref<24x1xf32, #tpu.memory_space<vmem>>, %arg10: memref<8x24xbf16, #tpu.memory_space<vmem>>, %arg11: memref<8x1xf32, #tpu.memory_space<vmem>>, %arg12: memref<8x128xf32, #tpu.memory_space<vmem>>) attributes {dimension_semantics = [#tpu.dimension_semantics<parallel>], iteration_bounds = array<i64: 1>, scalar_prefetch = 0 : i64, scratch_operands = 0 : i64, tpu.core_type = #tpu.core_type<tc>, window_params = [{transform_indices = @transform_0, window_bounds = array<i64: 16, 128>}, {pipeline_mode = #tpu.pipeline_mode<synchronous>, transform_indices = @transform_1, window_bounds = array<i64: 32, 16>}, {pipeline_mode = #tpu.pipeline_mode<synchronous>, transform_indices = @transform_2, window_bounds = array<i64: 32, 1>}, {pipeline_mode = #tpu.pipeline_mode<synchronous>, transform_indices = @transform_3, window_bounds = array<i64: 32, 32>}, {pipeline_mode = #tpu.pipeline_mode<synchronous>, transform_indices = @transform_4, window_bounds = array<i64: 32, 1>}, {pipeline_mode = #tpu.pipeline_mode<synchronous>, transform_indices = @transform_5, window_bounds = array<i64: 32, 32>}, {pipeline_mode = #tpu.pipeline_mode<synchronous>, transform_indices = @transform_6, window_bounds = array<i64: 32, 1>}, {pipeline_mode = #tpu.pipeline_mode<synchronous>, transform_indices = @transform_7, window_bounds = array<i64: 24, 32>}, {pipeline_mode = #tpu.pipeline_mode<synchronous>, transform_indices = @transform_8, window_bounds = array<i64: 24, 1>}, {pipeline_mode = #tpu.pipeline_mode<synchronous>, transform_indices = @transform_9, window_bounds = array<i64: 8, 24>}, {pipeline_mode = #tpu.pipeline_mode<synchronous>, transform_indices = @transform_10, window_bounds = array<i64: 8, 1>}, {transform_indices = @transform_11, window_bounds = array<i64: 8, 128>}]} {
    %c0 = arith.constant 0 : index
    %c0_0 = arith.constant 0 : index
    %0 = vector.load %arg1[%c0, %c0_0] : memref<16x128xf32, #tpu.memory_space<vmem>>, vector<16x128xf32>
    %1 = arith.truncf %0 : vector<16x128xf32> to vector<16x128xbf16>
    %c0_1 = arith.constant 0 : index
    %c0_2 = arith.constant 0 : index
    %2 = vector.load %arg2[%c0_1, %c0_2] : memref<32x16xbf16, #tpu.memory_space<vmem>>, vector<32x16xbf16>
    %c0_3 = arith.constant 0 : index
    %c0_4 = arith.constant 0 : index
    %3 = vector.load %arg3[%c0_3, %c0_4] : memref<32x1xf32, #tpu.memory_space<vmem>>, vector<32x1xf32>
    %cst = arith.constant dense<0.000000e+00> : vector<32x128xf32>
    %4 = tpu.matmul %2, %1, %cst {dimension_numbers = #tpu.dot_dimension_numbers<[1], [0], [0], [1], [0, 0, 1, 1], [], []>} : vector<32x16xbf16>, vector<16x128xbf16>, vector<32x128xf32> -> vector<32x128xf32>
    %5 = vector.broadcast %3 : vector<32x1xf32> to vector<32x128xf32>
    %6 = arith.addf %4, %5 : vector<32x128xf32>
    %cst_5 = arith.constant 0.000000e+00 : f32
    %7 = vector.broadcast %cst_5 : f32 to vector<32x128xf32>
    %8 = arith.maximumf %6, %7 : vector<32x128xf32>
    %9 = arith.truncf %8 : vector<32x128xf32> to vector<32x128xbf16>
    %c0_6 = arith.constant 0 : index
    %c0_7 = arith.constant 0 : index
    %10 = vector.load %arg4[%c0_6, %c0_7] : memref<32x32xbf16, #tpu.memory_space<vmem>>, vector<32x32xbf16>
    %c0_8 = arith.constant 0 : index
    %c0_9 = arith.constant 0 : index
    %11 = vector.load %arg5[%c0_8, %c0_9] : memref<32x1xf32, #tpu.memory_space<vmem>>, vector<32x1xf32>
    %cst_10 = arith.constant dense<0.000000e+00> : vector<32x128xf32>
    %12 = tpu.matmul %10, %9, %cst_10 {dimension_numbers = #tpu.dot_dimension_numbers<[1], [0], [0], [1], [0, 0, 1, 1], [], []>} : vector<32x32xbf16>, vector<32x128xbf16>, vector<32x128xf32> -> vector<32x128xf32>
    %13 = vector.broadcast %11 : vector<32x1xf32> to vector<32x128xf32>
    %14 = arith.addf %12, %13 : vector<32x128xf32>
    %cst_11 = arith.constant 0.000000e+00 : f32
    %15 = vector.broadcast %cst_11 : f32 to vector<32x128xf32>
    %16 = arith.maximumf %14, %15 : vector<32x128xf32>
    %17 = arith.truncf %16 : vector<32x128xf32> to vector<32x128xbf16>
    %c0_12 = arith.constant 0 : index
    %c0_13 = arith.constant 0 : index
    %18 = vector.load %arg6[%c0_12, %c0_13] : memref<32x32xbf16, #tpu.memory_space<vmem>>, vector<32x32xbf16>
    %c0_14 = arith.constant 0 : index
    %c0_15 = arith.constant 0 : index
    %19 = vector.load %arg7[%c0_14, %c0_15] : memref<32x1xf32, #tpu.memory_space<vmem>>, vector<32x1xf32>
    %cst_16 = arith.constant dense<0.000000e+00> : vector<32x128xf32>
    %20 = tpu.matmul %18, %17, %cst_16 {dimension_numbers = #tpu.dot_dimension_numbers<[1], [0], [0], [1], [0, 0, 1, 1], [], []>} : vector<32x32xbf16>, vector<32x128xbf16>, vector<32x128xf32> -> vector<32x128xf32>
    %21 = vector.broadcast %19 : vector<32x1xf32> to vector<32x128xf32>
    %22 = arith.addf %20, %21 : vector<32x128xf32>
    %cst_17 = arith.constant 0.000000e+00 : f32
    %23 = vector.broadcast %cst_17 : f32 to vector<32x128xf32>
    %24 = arith.maximumf %22, %23 : vector<32x128xf32>
    %25 = arith.truncf %24 : vector<32x128xf32> to vector<32x128xbf16>
    %c0_18 = arith.constant 0 : index
    %c0_19 = arith.constant 0 : index
    %26 = vector.load %arg8[%c0_18, %c0_19] : memref<24x32xbf16, #tpu.memory_space<vmem>>, vector<24x32xbf16>
    %c0_20 = arith.constant 0 : index
    %c0_21 = arith.constant 0 : index
    %27 = vector.load %arg9[%c0_20, %c0_21] : memref<24x1xf32, #tpu.memory_space<vmem>>, vector<24x1xf32>
    %cst_22 = arith.constant dense<0.000000e+00> : vector<24x128xf32>
    %28 = tpu.matmul %26, %25, %cst_22 {dimension_numbers = #tpu.dot_dimension_numbers<[1], [0], [0], [1], [0, 0, 1, 1], [], []>} : vector<24x32xbf16>, vector<32x128xbf16>, vector<24x128xf32> -> vector<24x128xf32>
    %29 = vector.broadcast %27 : vector<24x1xf32> to vector<24x128xf32>
    %30 = arith.addf %28, %29 : vector<24x128xf32>
    %cst_23 = arith.constant 0.000000e+00 : f32
    %31 = vector.broadcast %cst_23 : f32 to vector<24x128xf32>
    %32 = arith.maximumf %30, %31 : vector<24x128xf32>
    %33 = arith.truncf %32 : vector<24x128xf32> to vector<24x128xbf16>
    %c0_24 = arith.constant 0 : index
    %c0_25 = arith.constant 0 : index
    %34 = vector.load %arg10[%c0_24, %c0_25] : memref<8x24xbf16, #tpu.memory_space<vmem>>, vector<8x24xbf16>
    %c0_26 = arith.constant 0 : index
    %c0_27 = arith.constant 0 : index
    %35 = vector.load %arg11[%c0_26, %c0_27] : memref<8x1xf32, #tpu.memory_space<vmem>>, vector<8x1xf32>
    %cst_28 = arith.constant dense<0.000000e+00> : vector<8x128xf32>
    %36 = tpu.matmul %34, %33, %cst_28 {dimension_numbers = #tpu.dot_dimension_numbers<[1], [0], [0], [1], [0, 0, 1, 1], [], []>} : vector<8x24xbf16>, vector<24x128xbf16>, vector<8x128xf32> -> vector<8x128xf32>
    %37 = vector.broadcast %35 : vector<8x1xf32> to vector<8x128xf32>
    %38 = arith.addf %36, %37 : vector<8x128xf32>
    %c0_29 = arith.constant 0 : index
    %c0_30 = arith.constant 0 : index
    %39 = vector.load %arg12[%c0_29, %c0_30] : memref<8x128xf32, #tpu.memory_space<vmem>>, vector<8x128xf32>
    tpu.vector_store %arg12[%c0_29, %c0_30], %38 {strides = array<i32>} : memref<8x128xf32, #tpu.memory_space<vmem>>, vector<8x128xf32>,
    return
  }
  func.func @transform_0(%arg0: i32) -> (i32, i32) {
    %c0_i32 = arith.constant 0 : i32
    %c0_i32_0 = arith.constant 0 : i32
    return %c0_i32, %arg0 : i32, i32
  }
  func.func @transform_1(%arg0: i32) -> (i32, i32) {
    %c0_i32 = arith.constant 0 : i32
    %c0_i32_0 = arith.constant 0 : i32
    %c0_i32_1 = arith.constant 0 : i32
    return %c0_i32, %c0_i32_0 : i32, i32
  }
  func.func @transform_2(%arg0: i32) -> (i32, i32) {
    %c0_i32 = arith.constant 0 : i32
    %c0_i32_0 = arith.constant 0 : i32
    %c0_i32_1 = arith.constant 0 : i32
    return %c0_i32, %c0_i32_0 : i32, i32
  }
  func.func @transform_3(%arg0: i32) -> (i32, i32) {
    %c0_i32 = arith.constant 0 : i32
    %c0_i32_0 = arith.constant 0 : i32
    %c0_i32_1 = arith.constant 0 : i32
    return %c0_i32, %c0_i32_0 : i32, i32
  }
  func.func @transform_4(%arg0: i32) -> (i32, i32) {
    %c0_i32 = arith.constant 0 : i32
    %c0_i32_0 = arith.constant 0 : i32
    %c0_i32_1 = arith.constant 0 : i32
    return %c0_i32, %c0_i32_0 : i32, i32
  }
  func.func @transform_5(%arg0: i32) -> (i32, i32) {
    %c0_i32 = arith.constant 0 : i32
    %c0_i32_0 = arith.constant 0 : i32
    %c0_i32_1 = arith.constant 0 : i32
    return %c0_i32, %c0_i32_0 : i32, i32
  }
  func.func @transform_6(%arg0: i32) -> (i32, i32) {
    %c0_i32 = arith.constant 0 : i32
    %c0_i32_0 = arith.constant 0 : i32
    %c0_i32_1 = arith.constant 0 : i32
    return %c0_i32, %c0_i32_0 : i32, i32
  }
  func.func @transform_7(%arg0: i32) -> (i32, i32) {
    %c0_i32 = arith.constant 0 : i32
    %c0_i32_0 = arith.constant 0 : i32
    %c0_i32_1 = arith.constant 0 : i32
    return %c0_i32, %c0_i32_0 : i32, i32
  }
  func.func @transform_8(%arg0: i32) -> (i32, i32) {
    %c0_i32 = arith.constant 0 : i32
    %c0_i32_0 = arith.constant 0 : i32
    %c0_i32_1 = arith.constant 0 : i32
    return %c0_i32, %c0_i32_0 : i32, i32
  }
  func.func @transform_9(%arg0: i32) -> (i32, i32) {
    %c0_i32 = arith.constant 0 : i32
    %c0_i32_0 = arith.constant 0 : i32
    %c0_i32_1 = arith.constant 0 : i32
    return %c0_i32, %c0_i32_0 : i32, i32
  }
  func.func @transform_10(%arg0: i32) -> (i32, i32) {
    %c0_i32 = arith.constant 0 : i32
    %c0_i32_0 = arith.constant 0 : i32
    %c0_i32_1 = arith.constant 0 : i32
    return %c0_i32, %c0_i32_0 : i32, i32
  }
  func.func @transform_11(%arg0: i32) -> (i32, i32) {
    %c0_i32 = arith.constant 0 : i32
    %c0_i32_0 = arith.constant 0 : i32
    return %c0_i32, %arg0 : i32, i32
  }
}

</mosaic_0001>

<llo_original>
// kernel: tpu_custom_call.1
$region0: #{tpu_custom_call.1}
  #allocation0 [shape = 'u32[]', space=smem, size = 0x4, offset = 0x4, fixed_abs, tag = 'smem constant byte address 0x4 - core index']
  #allocation1 [shape = 'u32[144,128]{1,0:T(1,128)}', space=vmem, size = 0x12000, scoped, tag = 'internal scratch']
  %s0 = inlined_call_operand.vmem [shape: f32[16,128], index: 0, kind: input, shape index: {}]
  %s1 = inlined_call_operand.vmem [shape: bf16[32,16], index: 1, kind: input, shape index: {}]
  %s2 = inlined_call_operand.vmem [shape: f32[32,1], index: 2, kind: input, shape index: {}]
  %s3 = inlined_call_operand.vmem [shape: bf16[32,32], index: 3, kind: input, shape index: {}]
  %s4 = inlined_call_operand.vmem [shape: f32[32,1], index: 4, kind: input, shape index: {}]
  %s5 = inlined_call_operand.vmem [shape: bf16[32,32], index: 5, kind: input, shape index: {}]
  %s6 = inlined_call_operand.vmem [shape: f32[32,1], index: 6, kind: input, shape index: {}]
  %s7 = inlined_call_operand.vmem [shape: bf16[24,32], index: 7, kind: input, shape index: {}]
  %s8 = inlined_call_operand.vmem [shape: f32[24,1], index: 8, kind: input, shape index: {}]
  %s9 = inlined_call_operand.vmem [shape: bf16[8,24], index: 9, kind: input, shape index: {}]
  %s10 = inlined_call_operand.vmem [shape: f32[8,1], index: 10, kind: input, shape index: {}]
  %s11 = inlined_call_operand.hbm [shape: f32[8,128], index: 11, kind: output, shape index: {}]
  %s12 = sld [smem:[#allocation0]]
  $region54: #{tpu_custom_call.1} parent=0
    _
  %s14 = ssub.s32 1, %s12
  %s15 = scalar_select 0, %s14, %s12
  $region1: #{tpu_custom_call.1} parent=0
    #allocation2 [shape = 'u8[4096]{0}', space=vmem, size = 0x1000, scoped, tag = 'output window, operand 0, single buffered']
    #allocation3 [shape = 's32[1]{0}', space=sflag, size = 0x4, scoped, tag = 'scoped memory for tpu_custom_call.1']
    %16 = vsyncpa [#allocation3], 0
    // Predicated region
    $region2: #{tpu_custom_call.1} parent=1 // pred_check
      _
    $region3: #{tpu_custom_call.1} parent=1 // pred_check_branch
      %18 = sbr.rel (0) target = $region5
    $region4: #{tpu_custom_call.1} parent=1 // pred_region
      _
    $region5: #{tpu_custom_call.1} parent=1 // pred_fallthru
      _
    // Predicated region
    $region6: #{tpu_custom_call.1} parent=1 // pred_check
      _
    $region7: #{tpu_custom_call.1} parent=1 // pred_check_branch
      %20 = sbr.rel (0) target = $region9
    $region8: #{tpu_custom_call.1} parent=1 // pred_region
      _
    $region9: #{tpu_custom_call.1} parent=1 // pred_fallthru
      _
    // Predicated region
    $region10: #{tpu_custom_call.1} parent=1 // pred_check
      _
    $region11: #{tpu_custom_call.1} parent=1 // pred_check_branch
      %22 = sbr.rel (0) target = $region13
    $region12: #{tpu_custom_call.1} parent=1 // pred_region
      _
    $region13: #{tpu_custom_call.1} parent=1 // pred_fallthru
      _
    // Predicated region
    $region14: #{tpu_custom_call.1} parent=1 // pred_check
      _
    $region15: #{tpu_custom_call.1} parent=1 // pred_check_branch
      %24 = sbr.rel (0) target = $region17
    $region16: #{tpu_custom_call.1} parent=1 // pred_region
      _
    $region17: #{tpu_custom_call.1} parent=1 // pred_fallthru
      _
    // Predicated region
    $region18: #{tpu_custom_call.1} parent=1 // pred_check
      _
    $region19: #{tpu_custom_call.1} parent=1 // pred_check_branch
      %26 = sbr.rel (0) target = $region21
    $region20: #{tpu_custom_call.1} parent=1 // pred_region
      _
    $region21: #{tpu_custom_call.1} parent=1 // pred_fallthru
      _
    // Predicated region
    $region22: #{tpu_custom_call.1} parent=1 // pred_check
      _
    $region23: #{tpu_custom_call.1} parent=1 // pred_check_branch
      %28 = sbr.rel (0) target = $region25
    $region24: #{tpu_custom_call.1} parent=1 // pred_region
      _
    $region25: #{tpu_custom_call.1} parent=1 // pred_fallthru
      _
    // Predicated region
    $region26: #{tpu_custom_call.1} parent=1 // pred_check
      _
    $region27: #{tpu_custom_call.1} parent=1 // pred_check_branch
      %30 = sbr.rel (0) target = $region29
    $region28: #{tpu_custom_call.1} parent=1 // pred_region
      _
    $region29: #{tpu_custom_call.1} parent=1 // pred_fallthru
      _
    // Predicated region
    $region30: #{tpu_custom_call.1} parent=1 // pred_check
      _
    $region31: #{tpu_custom_call.1} parent=1 // pred_check_branch
      %32 = sbr.rel (0) target = $region33
    $region32: #{tpu_custom_call.1} parent=1 // pred_region
      _
    $region33: #{tpu_custom_call.1} parent=1 // pred_fallthru
      _
    // Predicated region
    $region34: #{tpu_custom_call.1} parent=1 // pred_check
      _
    $region35: #{tpu_custom_call.1} parent=1 // pred_check_branch
      %34 = sbr.rel (0) target = $region37
    $region36: #{tpu_custom_call.1} parent=1 // pred_region
      _
    $region37: #{tpu_custom_call.1} parent=1 // pred_fallthru
      _
    // Predicated region
    $region38: #{tpu_custom_call.1} parent=1 // pred_check
      _
    $region39: #{tpu_custom_call.1} parent=1 // pred_check_branch
      %36 = sbr.rel (0) target = $region41
    $region40: #{tpu_custom_call.1} parent=1 // pred_region
      _
    $region41: #{tpu_custom_call.1} parent=1 // pred_fallthru
      _
    // Predicated region
    $region42: #{tpu_custom_call.1} parent=1 // pred_check
      _
    $region43: #{tpu_custom_call.1} parent=1 // pred_check_branch
      %38 = sbr.rel (0) target = $region45
    $region44: #{tpu_custom_call.1} parent=1 // pred_region
      _
    $region45: #{tpu_custom_call.1} parent=1 // pred_fallthru
      _
    %v40 = vld [vmem:[%s0] sm:$0xff]
    %v41 = vld [vmem:[%s0 + $0x8] sm:$0xff]
    %v42 = vpack.c.bf16 %v41, %v40
    %v43 = vld [vmem:[%s1] sm:$0xf]
    %v44 = vld [vmem:[%s1 + $0x4] sm:$0xf]
    %v45 = vld [vmem:[%s1 + $0x8] sm:$0xf]
    %v46 = vld [vmem:[%s1 + $0xc] sm:$0xf]
    %v47 = vld [vmem:[%s2] sm:$0xff]
    %v48 = vld [vmem:[%s2 + $0x8] sm:$0xff]
    %v49 = vld [vmem:[%s2 + $0x10] sm:$0xff]
    %v50 = vld [vmem:[%s2 + $0x18] sm:$0xff]
    %52 = vset.pattern.permute.xlu0 0
    %53 = vperm.xlu0 %52, %v47
    %v54 = vpop.permute.xlu0 %53
    %57 = vset.pattern.permute.xlu0 0
    %58 = vperm.xlu0 %57, %v48
    %v59 = vpop.permute.xlu0 %58
    %62 = vset.pattern.permute.xlu0 0
    %63 = vperm.xlu0 %62, %v49
    %v64 = vpop.permute.xlu0 %63
    %67 = vset.pattern.permute.xlu0 0
    %68 = vperm.xlu0 %67, %v50
    %v69 = vpop.permute.xlu0 %68
    %v75 = vunpack.c.l.b16 %v43
    %v76 = vunpack.c.l.b16 %v44
    %v77 = vunpack.c.l.b16 %v45
    %v78 = vunpack.c.l.b16 %v46
    %v79 = vpack.c.b16 %v76, %v75
    %v80 = vpack.c.b16 %v78, %v77
    %vm81 = vcmask 130048
    %v83 = vsel %vm81, %v79, 0
    %v86 = vsel %vm81, %v80, 0
    %88 = vmatprep.subr.bf16.mxu0 0
    %89 = vmatpush1.bf16.msra.mxu0 %v42
    %90 = vmatprep.subr.bf16.mxu0 0
    %91 = vmatpush1.bf16.msra.mxu0 0
    %92 = vmatprep.subr.bf16.mxu0 0
    %93 = vmatpush1.bf16.msra.mxu0 0
    %94 = vmatprep.subr.bf16.mxu0 0
    %95 = vmatpush1.bf16.msra.mxu0 0
    %96 = vmatprep.subr.bf16.mxu0 0
    %97 = vmatpush1.bf16.msra.mxu0 0
    %98 = vmatprep.subr.bf16.mxu0 0
    %99 = vmatpush1.bf16.msra.mxu0 0
    %100 = vmatprep.subr.bf16.mxu0 0
    %101 = vmatpush1.bf16.msra.mxu0 0
    %102 = vmatprep.subr.bf16.mxu0 0
    %103 = vmatpush1.bf16.msra.mxu0 0
    %104 = vmatprep.subr.bf16.mxu0 0
    %105 = vmatpush1.bf16.msra.mxu0 0
    %106 = vmatprep.subr.bf16.mxu0 0
    %107 = vmatpush1.bf16.msra.mxu0 0
    %108 = vmatprep.subr.bf16.mxu0 0
    %109 = vmatpush1.bf16.msra.mxu0 0
    %110 = vmatprep.subr.bf16.mxu0 0
    %111 = vmatpush1.bf16.msra.mxu0 0
    %112 = vmatprep.subr.bf16.mxu0 0
    %113 = vmatpush1.bf16.msra.mxu0 0
    %114 = vmatprep.subr.bf16.mxu0 0
    %115 = vmatpush1.bf16.msra.mxu0 0
    %116 = vmatprep.subr.bf16.mxu0 0
    %117 = vmatpush1.bf16.msra.mxu0 0
    %118 = vmatprep.subr.bf16.mxu0 0
    %119 = vmatpush1.bf16.msra.mxu0 0
    %120 = vmatprep.mubr.bf16.mxu0 0
    %121 = vmatmul.mubr.bf16.gmra.mrb[0].mxu0 %v83
    %v122 = vpop.f32.mrb[0].mxu0
    %v123 = vadd.f32 %v54, %v122
    %v124 = vpop.f32.mrb[0].mxu0
    %v125 = vpop.f32.mrb[0].mxu0
    %v126 = vadd.f32 %v59, %v125
    %v127 = vpop.f32.mrb[0].mxu0
    %128 = vmatprep.mubr.bf16.mxu0 0
    %129 = vmatmul.mubr.bf16.gmra.mrb[0].mxu0 %v86
    %v130 = vpop.f32.mrb[0].mxu0
    %v131 = vadd.f32 %v64, %v130
    %v132 = vpop.f32.mrb[0].mxu0
    %v133 = vpop.f32.mrb[0].mxu0
    %v134 = vadd.f32 %v69, %v133
    %v135 = vpop.f32.mrb[0].mxu0
    %136 = vdwg.mxu0
    %v137 = vmax.f32 %v123, 0.0
    %v138 = vmax.f32 %v126, 0.0
    %v139 = vmax.f32 %v131, 0.0
    %v140 = vmax.f32 %v134, 0.0
    %v141 = vpack.c.bf16 %v138, %v137
    %v142 = vpack.c.bf16 %v140, %v139
    %v143 = vld [vmem:[%s3] sm:$0xf]
    %v144 = vld [vmem:[%s3 + $0x4] sm:$0xf]
    %v145 = vld [vmem:[%s3 + $0x8] sm:$0xf]
    %v146 = vld [vmem:[%s3 + $0xc] sm:$0xf]
    %v147 = vld [vmem:[%s4] sm:$0xff]
    %v148 = vld [vmem:[%s4 + $0x8] sm:$0xff]
    %v149 = vld [vmem:[%s4 + $0x10] sm:$0xff]
    %v150 = vld [vmem:[%s4 + $0x18] sm:$0xff]
    %152 = vset.pattern.permute.xlu0 0
    %153 = vperm.xlu0 %152, %v147
    %v154 = vpop.permute.xlu0 %153
    %157 = vset.pattern.permute.xlu0 0
    %158 = vperm.xlu0 %157, %v148
    %v159 = vpop.permute.xlu0 %158
    %162 = vset.pattern.permute.xlu0 0
    %163 = vperm.xlu0 %162, %v149
    %v164 = vpop.permute.xlu0 %163
    %167 = vset.pattern.permute.xlu0 0
    %168 = vperm.xlu0 %167, %v150
    %v169 = vpop.permute.xlu0 %168
    %v175 = vunpack.c.l.b16 %v143
    %v176 = vunpack.c.l.b16 %v144
    %v177 = vunpack.c.l.b16 %v145
    %v178 = vunpack.c.l.b16 %v146
    %v179 = vpack.c.b16 %v176, %v175
    %v180 = vpack.c.b16 %v178, %v177
    %vm181 = vcmask 261120
    %v183 = vsel %vm181, %v179, 0
    %v186 = vsel %vm181, %v180, 0
    %188 = vmatprep.subr.bf16.mxu0 0
    %189 = vmatpush1.bf16.msra.mxu0 %v141
    %190 = vmatprep.subr.bf16.mxu0 0
    %191 = vmatpush1.bf16.msra.mxu0 %v142
    %192 = vmatprep.subr.bf16.mxu0 0
    %193 = vmatpush1.bf16.msra.mxu0 0
    %194 = vmatprep.subr.bf16.mxu0 0
    %195 = vmatpush1.bf16.msra.mxu0 0
    %196 = vmatprep.subr.bf16.mxu0 0
    %197 = vmatpush1.bf16.msra.mxu0 0
    %198 = vmatprep.subr.bf16.mxu0 0
    %199 = vmatpush1.bf16.msra.mxu0 0
    %200 = vmatprep.subr.bf16.mxu0 0
    %201 = vmatpush1.bf16.msra.mxu0 0
    %202 = vmatprep.subr.bf16.mxu0 0
    %203 = vmatpush1.bf16.msra.mxu0 0
    %204 = vmatprep.subr.bf16.mxu0 0
    %205 = vmatpush1.bf16.msra.mxu0 0
    %206 = vmatprep.subr.bf16.mxu0 0
    %207 = vmatpush1.bf16.msra.mxu0 0
    %208 = vmatprep.subr.bf16.mxu0 0
    %209 = vmatpush1.bf16.msra.mxu0 0
    %210 = vmatprep.subr.bf16.mxu0 0
    %211 = vmatpush1.bf16.msra.mxu0 0
    %212 = vmatprep.subr.bf16.mxu0 0
    %213 = vmatpush1.bf16.msra.mxu0 0
    %214 = vmatprep.subr.bf16.mxu0 0
    %215 = vmatpush1.bf16.msra.mxu0 0
    %216 = vmatprep.subr.bf16.mxu0 0
    %217 = vmatpush1.bf16.msra.mxu0 0
    %218 = vmatprep.subr.bf16.mxu0 0
    %219 = vmatpush1.bf16.msra.mxu0 0
    %220 = vmatprep.mubr.bf16.mxu0 0
    %221 = vmatmul.mubr.bf16.gmra.mrb[0].mxu0 %v183
    %v222 = vpop.f32.mrb[0].mxu0
    %v223 = vadd.f32 %v154, %v222
    %v224 = vpop.f32.mrb[0].mxu0
    %v225 = vpop.f32.mrb[0].mxu0
    %v226 = vadd.f32 %v159, %v225
    %v227 = vpop.f32.mrb[0].mxu0
    %228 = vmatprep.mubr.bf16.mxu0 0
    %229 = vmatmul.mubr.bf16.gmra.mrb[0].mxu0 %v186
    %v230 = vpop.f32.mrb[0].mxu0
    %v231 = vadd.f32 %v164, %v230
    %v232 = vpop.f32.mrb[0].mxu0
    %v233 = vpop.f32.mrb[0].mxu0
    %v234 = vadd.f32 %v169, %v233
    %v235 = vpop.f32.mrb[0].mxu0
    %236 = vdwg.mxu0
    %v237 = vmax.f32 %v223, 0.0
    %v238 = vmax.f32 %v226, 0.0
    %v239 = vmax.f32 %v231, 0.0
    %v240 = vmax.f32 %v234, 0.0
    %v241 = vpack.c.bf16 %v238, %v237
    %v242 = vpack.c.bf16 %v240, %v239
    %v243 = vld [vmem:[%s5] sm:$0xf]
    %v244 = vld [vmem:[%s5 + $0x4] sm:$0xf]
    %v245 = vld [vmem:[%s5 + $0x8] sm:$0xf]
    %v246 = vld [vmem:[%s5 + $0xc] sm:$0xf]
    %v247 = vld [vmem:[%s6] sm:$0xff]
    %v248 = vld [vmem:[%s6 + $0x8] sm:$0xff]
    %v249 = vld [vmem:[%s6 + $0x10] sm:$0xff]
    %v250 = vld [vmem:[%s6 + $0x18] sm:$0xff]
    %252 = vset.pattern.permute.xlu0 0
    %253 = vperm.xlu0 %252, %v247
    %v254 = vpop.permute.xlu0 %253
    %257 = vset.pattern.permute.xlu0 0
    %258 = vperm.xlu0 %257, %v248
    %v259 = vpop.permute.xlu0 %258
    %262 = vset.pattern.permute.xlu0 0
    %263 = vperm.xlu0 %262, %v249
    %v264 = vpop.permute.xlu0 %263
    %267 = vset.pattern.permute.xlu0 0
    %268 = vperm.xlu0 %267, %v250
    %v269 = vpop.permute.xlu0 %268
    %v275 = vunpack.c.l.b16 %v243
    %v276 = vunpack.c.l.b16 %v244
    %v277 = vunpack.c.l.b16 %v245
    %v278 = vunpack.c.l.b16 %v246
    %v279 = vpack.c.b16 %v276, %v275
    %v280 = vpack.c.b16 %v278, %v277
    %v282 = vsel %vm181, %v279, 0
    %v285 = vsel %vm181, %v280, 0
    %287 = vmatprep.subr.bf16.mxu0 0
    %288 = vmatpush1.bf16.msra.mxu0 %v241
    %289 = vmatprep.subr.bf16.mxu0 0
    %290 = vmatpush1.bf16.msra.mxu0 %v242
    %291 = vmatprep.subr.bf16.mxu0 0
    %292 = vmatpush1.bf16.msra.mxu0 0
    %293 = vmatprep.subr.bf16.mxu0 0
    %294 = vmatpush1.bf16.msra.mxu0 0
    %295 = vmatprep.subr.bf16.mxu0 0
    %296 = vmatpush1.bf16.msra.mxu0 0
    %297 = vmatprep.subr.bf16.mxu0 0
    %298 = vmatpush1.bf16.msra.mxu0 0
    %299 = vmatprep.subr.bf16.mxu0 0
    %300 = vmatpush1.bf16.msra.mxu0 0
    %301 = vmatprep.subr.bf16.mxu0 0
    %302 = vmatpush1.bf16.msra.mxu0 0
    %303 = vmatprep.subr.bf16.mxu0 0
    %304 = vmatpush1.bf16.msra.mxu0 0
    %305 = vmatprep.subr.bf16.mxu0 0
    %306 = vmatpush1.bf16.msra.mxu0 0
    %307 = vmatprep.subr.bf16.mxu0 0
    %308 = vmatpush1.bf16.msra.mxu0 0
    %309 = vmatprep.subr.bf16.mxu0 0
    %310 = vmatpush1.bf16.msra.mxu0 0
    %311 = vmatprep.subr.bf16.mxu0 0
    %312 = vmatpush1.bf16.msra.mxu0 0
    %313 = vmatprep.subr.bf16.mxu0 0
    %314 = vmatpush1.bf16.msra.mxu0 0
    %315 = vmatprep.subr.bf16.mxu0 0
    %316 = vmatpush1.bf16.msra.mxu0 0
    %317 = vmatprep.subr.bf16.mxu0 0
    %318 = vmatpush1.bf16.msra.mxu0 0
    %319 = vmatprep.mubr.bf16.mxu0 0
    %320 = vmatmul.mubr.bf16.gmra.mrb[0].mxu0 %v282
    %v321 = vpop.f32.mrb[0].mxu0
    %v322 = vadd.f32 %v254, %v321
    %v323 = vpop.f32.mrb[0].mxu0
    %v324 = vpop.f32.mrb[0].mxu0
    %v325 = vadd.f32 %v259, %v324
    %v326 = vpop.f32.mrb[0].mxu0
    %327 = vmatprep.mubr.bf16.mxu0 0
    %328 = vmatmul.mubr.bf16.gmra.mrb[0].mxu0 %v285
    %v329 = vpop.f32.mrb[0].mxu0
    %v330 = vadd.f32 %v264, %v329
    %v331 = vpop.f32.mrb[0].mxu0
    %v332 = vpop.f32.mrb[0].mxu0
    %v333 = vadd.f32 %v269, %v332
    %v334 = vpop.f32.mrb[0].mxu0
    %335 = vdwg.mxu0
    %v336 = vmax.f32 %v322, 0.0
    %v337 = vmax.f32 %v325, 0.0
    %v338 = vmax.f32 %v330, 0.0
    %v339 = vmax.f32 %v333, 0.0
    %v340 = vpack.c.bf16 %v337, %v336
    %v341 = vpack.c.bf16 %v339, %v338
    %v342 = vld [vmem:[%s7] sm:$0xf]
    %v343 = vld [vmem:[%s7 + $0x4] sm:$0xf]
    %v344 = vld [vmem:[%s7 + $0x8] sm:$0xf]
    %v345 = vld [vmem:[%s8] sm:$0xff]
    %v346 = vld [vmem:[%s8 + $0x8] sm:$0xff]
    %v347 = vld [vmem:[%s8 + $0x10] sm:$0xff]
    %349 = vset.pattern.permute.xlu0 0
    %350 = vperm.xlu0 %349, %v345
    %v351 = vpop.permute.xlu0 %350
    %354 = vset.pattern.permute.xlu0 0
    %355 = vperm.xlu0 %354, %v346
    %v356 = vpop.permute.xlu0 %355
    %359 = vset.pattern.permute.xlu0 0
    %360 = vperm.xlu0 %359, %v347
    %v361 = vpop.permute.xlu0 %360
    %v366 = vunpack.c.l.b16 %v342
    %v367 = vunpack.c.l.b16 %v343
    %v368 = vunpack.c.l.b16 %v344
    %v369 = vpack.c.b16 %v367, %v366
    %v370 = vpack.c.b16 %v368, %v368
    %v372 = vsel %vm181, %v369, 0
    %v375 = vsel %vm181, %v370, 0
    %377 = vmatprep.subr.bf16.mxu0 0
    %378 = vmatpush1.bf16.msra.mxu0 %v340
    %379 = vmatprep.subr.bf16.mxu0 0
    %380 = vmatpush1.bf16.msra.mxu0 %v341
    %381 = vmatprep.subr.bf16.mxu0 0
    %382 = vmatpush1.bf16.msra.mxu0 0
    %383 = vmatprep.subr.bf16.mxu0 0
    %384 = vmatpush1.bf16.msra.mxu0 0
    %385 = vmatprep.subr.bf16.mxu0 0
    %386 = vmatpush1.bf16.msra.mxu0 0
    %387 = vmatprep.subr.bf16.mxu0 0
    %388 = vmatpush1.bf16.msra.mxu0 0
    %389 = vmatprep.subr.bf16.mxu0 0
    %390 = vmatpush1.bf16.msra.mxu0 0
    %391 = vmatprep.subr.bf16.mxu0 0
    %392 = vmatpush1.bf16.msra.mxu0 0
    %393 = vmatprep.subr.bf16.mxu0 0
    %394 = vmatpush1.bf16.msra.mxu0 0
    %395 = vmatprep.subr.bf16.mxu0 0
    %396 = vmatpush1.bf16.msra.mxu0 0
    %397 = vmatprep.subr.bf16.mxu0 0
    %398 = vmatpush1.bf16.msra.mxu0 0
    %399 = vmatprep.subr.bf16.mxu0 0
    %400 = vmatpush1.bf16.msra.mxu0 0
    %401 = vmatprep.subr.bf16.mxu0 0
    %402 = vmatpush1.bf16.msra.mxu0 0
    %403 = vmatprep.subr.bf16.mxu0 0
    %404 = vmatpush1.bf16.msra.mxu0 0
    %405 = vmatprep.subr.bf16.mxu0 0
    %406 = vmatpush1.bf16.msra.mxu0 0
    %407 = vmatprep.subr.bf16.mxu0 0
    %408 = vmatpush1.bf16.msra.mxu0 0
    %409 = vmatprep.mubr.bf16.mxu0 0
    %410 = vmatmul.mubr.bf16.gmra.mrb[0].mxu0 %v372
    %v411 = vpop.f32.mrb[0].mxu0
    %v412 = vadd.f32 %v351, %v411
    %v413 = vpop.f32.mrb[0].mxu0
    %v414 = vpop.f32.mrb[0].mxu0
    %v415 = vadd.f32 %v356, %v414
    %v416 = vpop.f32.mrb[0].mxu0
    %417 = vmatprep.mubr.bf16.mxu0 0
    %418 = vmatmul.mubr.bf16.gmra.mrb[0].mxu0 %v375
    %v419 = vpop.f32.mrb[0].mxu0
    %v420 = vadd.f32 %v361, %v419
    %v421 = vpop.f32.mrb[0].mxu0
    %v422 = vpop.f32.mrb[0].mxu0
    %v423 = vpop.f32.mrb[0].mxu0
    %424 = vdwg.mxu0
    %v425 = vmax.f32 %v412, 0.0
    %v426 = vmax.f32 %v415, 0.0
    %v427 = vmax.f32 %v420, 0.0
    %v428 = vpack.c.bf16 %v426, %v425
    %v429 = vpack.c.bf16 %v427, %v427
    %v430 = vld [vmem:[%s9] sm:$0xf]
    %v431 = vld [vmem:[%s10] sm:$0xff]
    %433 = vset.pattern.permute.xlu0 0
    %434 = vperm.xlu0 %433, %v431
    %v435 = vpop.permute.xlu0 %434
    %vm437 = vcmask 195584
    %v439 = vsel %vm437, %v430, 0
    %vm441 = vcmask 1043456
    %v443 = vsel %vm441, %v429, 0
    %445 = vmatprep.subr.bf16.mxu0 0
    %446 = vmatpush1.bf16.msra.mxu0 %v428
    %447 = vmatprep.subr.bf16.mxu0 0
    %448 = vmatpush1.bf16.msra.mxu0 %v443
    %449 = vmatprep.subr.bf16.mxu0 0
    %450 = vmatpush1.bf16.msra.mxu0 0
    %451 = vmatprep.subr.bf16.mxu0 0
    %452 = vmatpush1.bf16.msra.mxu0 0
    %453 = vmatprep.subr.bf16.mxu0 0
    %454 = vmatpush1.bf16.msra.mxu0 0
    %455 = vmatprep.subr.bf16.mxu0 0
    %456 = vmatpush1.bf16.msra.mxu0 0
    %457 = vmatprep.subr.bf16.mxu0 0
    %458 = vmatpush1.bf16.msra.mxu0 0
    %459 = vmatprep.subr.bf16.mxu0 0
    %460 = vmatpush1.bf16.msra.mxu0 0
    %461 = vmatprep.subr.bf16.mxu0 0
    %462 = vmatpush1.bf16.msra.mxu0 0
    %463 = vmatprep.subr.bf16.mxu0 0
    %464 = vmatpush1.bf16.msra.mxu0 0
    %465 = vmatprep.subr.bf16.mxu0 0
    %466 = vmatpush1.bf16.msra.mxu0 0
    %467 = vmatprep.subr.bf16.mxu0 0
    %468 = vmatpush1.bf16.msra.mxu0 0
    %469 = vmatprep.subr.bf16.mxu0 0
    %470 = vmatpush1.bf16.msra.mxu0 0
    %471 = vmatprep.subr.bf16.mxu0 0
    %472 = vmatpush1.bf16.msra.mxu0 0
    %473 = vmatprep.subr.bf16.mxu0 0
    %474 = vmatpush1.bf16.msra.mxu0 0
    %475 = vmatprep.subr.bf16.mxu0 0
    %476 = vmatpush1.bf16.msra.mxu0 0
    %477 = vmatprep.mubr.bf16.mxu0 0
    %478 = vmatmul.mubr.bf16.gmra.mrb[0].mxu0 %v439
    %v479 = vpop.f32.mrb[0].mxu0
    %v480 = vadd.f32 %v435, %v479
    %v481 = vpop.f32.mrb[0].mxu0
    %v482 = vpop.f32.mrb[0].mxu0
    %v483 = vpop.f32.mrb[0].mxu0
    %484 = vdwg.mxu0
    %485 = vst [vmem:[#allocation2] sm:$0xff] %v480
    // Predicated region
    $region46: #{tpu_custom_call.1} parent=1 // pred_check
      _
    $region47: #{tpu_custom_call.1} parent=1 // pred_check_branch
      %487 = sbr.rel (0) target = $region49
    $region48: #{tpu_custom_call.1} parent=1 // pred_region
      %s489 = ssub.s32 128, 128
      %490 = vsyncadd [#allocation3], %s489
      %s492 = sshll.u32 [#allocation2], 4
      %s493 = int_to_ptr.vmem [resolvable:$true] %s492
      %495 = dma.vmem_to_hbm [thread:$0]  %s493, 128, %s11, [#allocation3]
    $region49: #{tpu_custom_call.1} parent=1 // pred_fallthru
      _
    // Predicated region
    $region50: #{tpu_custom_call.1} parent=1 // pred_check
      _
    $region51: #{tpu_custom_call.1} parent=1 // pred_check_branch
      %497 = sbr.rel (0) target = $region53
    $region52: #{tpu_custom_call.1} parent=1 // pred_region
      %498 = dma.done [#allocation3], 128
    $region53: #{tpu_custom_call.1} parent=1 // pred_fallthru
      _
    %499 = vsyncpa [#allocation3], 1

</llo_original>
